<compile_context>
chip_gen: v7x
topology: tpu7x:2x2x1
jax: 0.10.0
libtpu: 0.0.40
codegen_flags: <defaults>
</compile_context>

<pallas_src>
import functools

import jax
import jax.numpy as jnp
from jax.experimental import pallas as pl
from jax.experimental.pallas import tpu as pltpu

Z_DIM = 10                      # per-encoder latent dim -> concat length 20
L0 = 2 * Z_DIM                  # Conv1d input length (in_channels = 1)
K1, S1, C1 = 7, 3, 10
P1 = (L0 - K1) // S1 + 1        # = 5
K2, S2, C2 = 5, 2, 20
P2 = (P1 - K2) // S2 + 1        # = 1  (so .squeeze(-1) is valid)
N_CLS = 2
TAU = 1.0
assert P1 == 5 and P2 == 1 and K2 == P1


def _round_up(x, m):
    return (x + m - 1) // m * m


def socialdec_kernel(x_ref,
                     w_enc_ref, b_enc_ref,
                     w1x_ref, s1x_ref, t1x_ref,
                     w2f_ref, s2_ref, t2_ref,
                     w3_ref, b3_ref,
                     z_ref, w_ref):
    x = x_ref[...]                                              # (TB, D_IMG+D_TXT)

    # --- fused encoders: block-diagonal weight -> [image_z | text_z] -------
    z_raw = jnp.dot(x, w_enc_ref[...],
                    preferred_element_type=jnp.float32) + b_enc_ref[...]   # (TB, 20)
    z_ref[...] = z_raw

    # --- per-half F.normalize(p=2, dim=1) without lane slicing -------------
    # torch: x / max(||x||, 1e-12)  ==  x * rsqrt(max(||x||^2, 1e-24))
    lane = jax.lax.broadcasted_iota(jnp.int32, (1, 2 * Z_DIM), 1)
    is_img = lane < Z_DIM                                        # (1, 20)
    sq = z_raw * z_raw
    ss_img = jnp.sum(jnp.where(is_img, sq, 0.0), axis=1, keepdims=True)
    ss_txt = jnp.sum(sq, axis=1, keepdims=True) - ss_img
    inv_img = jax.lax.rsqrt(jnp.maximum(ss_img, 1e-24))
    inv_txt = jax.lax.rsqrt(jnp.maximum(ss_txt, 1e-24))
    z = z_raw * jnp.where(is_img, inv_img, inv_txt)              # (TB, 20)

    # --- weight_calculator1: banded conv1 matmul + folded BN + ReLU --------
    h = jnp.dot(z, w1x_ref[...], preferred_element_type=jnp.float32)   # (TB, 50)
    h = jnp.maximum(h * s1x_ref[...] + t1x_ref[...], 0.0)

    # --- weight_calculator2: flattened conv2 matmul + folded BN + ReLU -----
    g = jnp.dot(h, w2f_ref[...], preferred_element_type=jnp.float32)   # (TB, 20)
    g = jnp.maximum(g * s2_ref[...] + t2_ref[...], 0.0)

    # --- weight_calculator3: Linear(20,2) + Sigmoid, /tau, Softmax(dim=1) --
    s = jnp.dot(g, w3_ref[...], preferred_element_type=jnp.float32) + b3_ref[...]
    s = jax.nn.sigmoid(s) * (1.0 / TAU)
    # sigmoid-bounded logits (|s| <= 1/tau) -> no max-stabilization needed
    e = jnp.exp(s)
    denom = jnp.sum(e, axis=1, keepdims=True)
    w_ref[...] = e * pl.reciprocal(denom, approx=True)


def pack_params(params, d_img):
    """Host-side repack of PyTorch-style params into kernel-friendly matmuls."""
    assert params["w2"].shape[0] == P1, "conv2 kernel size must equal conv1 output length"
    d_txt = params["we_t"].shape[0]

    # block-diagonal encoder weight: x_cat @ w_enc = [img_z | txt_z]
    w_enc = jnp.zeros((d_img + d_txt, 2 * Z_DIM), jnp.float32)
    w_enc = w_enc.at[:d_img, :Z_DIM].set(params["we_i"])
    w_enc = w_enc.at[d_img:, Z_DIM:].set(params["we_t"])
    b_enc = jnp.concatenate([params["be_i"], params["be_t"]], axis=1)

    # banded conv1 weight: (L0, P1*C1), column block p holds w1 at rows S1*p..S1*p+K1
    w1x = jnp.zeros((L0, P1 * C1), jnp.float32)
    for p in range(P1):
        w1x = w1x.at[S1 * p:S1 * p + K1, p * C1:(p + 1) * C1].set(params["w1"])
    s1x = jnp.tile(params["bn1s"], (1, P1))
    t1x = jnp.tile(params["b1"] * params["bn1s"] + params["bn1b"], (1, P1))

    # flattened conv2 weight: (P1*C1, C2)
    w2f = params["w2"].reshape(P1 * C1, C2)
    s2 = params["bn2s"]
    t2 = params["b2"] * params["bn2s"] + params["bn2b"]

    return dict(w_enc=w_enc, b_enc=b_enc, w1x=w1x, s1x=s1x, t1x=t1x,
                w2f=w2f, s2=s2, t2=t2, w3=params["w3"], b3=params["b3"])


def socialdec_forward(img_x, txt_x, params, *, tb=None):
    B, d_img = img_x.shape
    packed = pack_params(params, d_img)

    x_cat = jnp.concatenate([img_x, txt_x], axis=1).astype(jnp.float32)
    dcat = x_cat.shape[1]

    # Batch tile: big enough to amortize per-step overhead, small enough to be
    # safe inside v7x's 64 MiB physical / 32 MiB default-scoped VMEM even with
    # double buffering (activations here are tiny per row).
    if tb is None:
        tb = min(512, _round_up(B, 8))
    b_pad = _round_up(B, tb)
    if b_pad != B:
        x_cat = jnp.pad(x_cat, ((0, b_pad - B), (0, 0)))
    nb = b_pad // tb

    weight_names = ("w_enc", "b_enc", "w1x", "s1x", "t1x",
                    "w2f", "s2", "t2", "w3", "b3")
    weights = [packed[k] for k in weight_names]

    row_spec = lambda d: pl.BlockSpec((tb, d), lambda i: (i, 0))
    const_spec = lambda a: pl.BlockSpec(a.shape, lambda i: (0, 0))

    flops = 2 * b_pad * (dcat * 2 * Z_DIM + 2 * Z_DIM * P1 * C1
                         + P1 * C1 * C2 + C2 * N_CLS)
    bytes_accessed = 4 * (x_cat.size + b_pad * (2 * Z_DIM + N_CLS)
                          + sum(int(w.size) for w in weights))
    transcendentals = 7 * b_pad   # 2 rsqrt + 2 sigmoid + 2 exp + 1 rcp per row

    out_shapes = (
        jax.ShapeDtypeStruct((b_pad, 2 * Z_DIM), jnp.float32),   # [image_z | text_z]
        jax.ShapeDtypeStruct((b_pad, N_CLS), jnp.float32),       # w
    )

    z_out, w_out = pl.pallas_call(
        socialdec_kernel,
        out_shape=out_shapes,
        grid=(nb,),
        in_specs=[row_spec(dcat)] + [const_spec(w) for w in weights],
        out_specs=(row_spec(2 * Z_DIM), row_spec(N_CLS)),
        compiler_params=pltpu.CompilerParams(
            dimension_semantics=("parallel",)),
        cost_estimate=pl.CostEstimate(
            flops=int(flops),
            transcendentals=int(transcendentals),
            bytes_accessed=int(bytes_accessed)),
    )(x_cat, *weights)

    image_z = z_out[:B, :Z_DIM]
    text_z = z_out[:B, Z_DIM:]
    return image_z, text_z, w_out[:B]


def socialdec_ref(img_x, txt_x, p):
    """Pure-JAX reference matching the original PyTorch forward."""
    img_z = img_x @ p["we_i"] + p["be_i"]
    txt_z = txt_x @ p["we_t"] + p["be_t"]

    def l2n(x):
        n = jnp.sqrt(jnp.sum(x * x, axis=1, keepdims=True))
        return x / jnp.maximum(n, 1e-12)

    z = jnp.concatenate([l2n(img_z), l2n(txt_z)], axis=1)
    acc = jnp.zeros((z.shape[0], C2), jnp.float32) + p["b2"]
    for q in range(P1):
        patch = z[:, S1 * q: S1 * q + K1]
        h = jnp.maximum((patch @ p["w1"] + p["b1"]) * p["bn1s"] + p["bn1b"], 0.0)
        acc = acc + h @ p["w2"][q]
    g = jnp.maximum(acc * p["bn2s"] + p["bn2b"], 0.0)
    s = jax.nn.sigmoid(g @ p["w3"] + p["b3"]) / TAU
    e = jnp.exp(s - jnp.max(s, axis=1, keepdims=True))
    w = e / jnp.sum(e, axis=1, keepdims=True)
    return img_z, txt_z, w


def make_params(key, d_img, d_txt):
    ks = jax.random.split(key, 20)
    r = lambda k, shp, s=0.1: s * jax.random.normal(k, shp, dtype=jnp.float32)

    params = {
        # synthetic linear encoders (image_encoder / text_encoder stand-ins)
        "we_i": r(ks[0], (d_img, Z_DIM)), "be_i": r(ks[1], (1, Z_DIM)),
        "we_t": r(ks[2], (d_txt, Z_DIM)), "be_t": r(ks[3], (1, Z_DIM)),
        # Conv1d(1,10,7): torch weight (10,1,7) stored here as (K1, C1)
        "w1": r(ks[4], (K1, C1)), "b1": r(ks[5], (1, C1)),
        # Conv1d(10,20,5): torch weight (20,10,5) stored here as (P1==K2, C1, C2)
        "w2": r(ks[6], (P1, C1, C2)), "b2": r(ks[7], (1, C2)),
        # Linear(20,2): torch weight (2,20) stored here as (20,2)
        "w3": r(ks[8], (2 * Z_DIM, N_CLS)), "b3": r(ks[9], (1, N_CLS)),
    }

    # eval-mode BatchNorm folded to per-channel affine scale/shift
    def bn_fold(kg, kb, km, kv, c):
        gamma = 1.0 + r(kg, (1, c))
        beta = r(kb, (1, c))
        mean = r(km, (1, c))
        var = 1.0 + jnp.abs(r(kv, (1, c)))
        scale = gamma / jnp.sqrt(var + 1e-5)
        shift = beta - mean * scale
        return scale.astype(jnp.float32), shift.astype(jnp.float32)

    params["bn1s"], params["bn1b"] = bn_fold(ks[10], ks[11], ks[12], ks[13], C1)
    params["bn2s"], params["bn2b"] = bn_fold(ks[14], ks[15], ks[16], ks[17], C2)
    return params


if __name__ == "__main__":
    B, D_IMG, D_TXT = 8, 16, 16
    key = jax.random.PRNGKey(0)
    k_img, k_txt, k_par = jax.random.split(key, 3)

    image_x = jax.random.normal(k_img, (B, D_IMG), dtype=jnp.float32)
    text_x = jax.random.normal(k_txt, (B, D_TXT), dtype=jnp.float32)
    params = make_params(k_par, D_IMG, D_TXT)

    image_z, text_z, w = socialdec_forward(image_x, text_x, params)
    jax.block_until_ready((image_z, text_z, w))

    assert image_z.shape == (B, Z_DIM)
    assert text_z.shape == (B, Z_DIM)
    assert w.shape == (B, N_CLS)

    # softmax rows sum to 1 (tolerance covers the approx reciprocal on the EUP)
    assert bool(jnp.allclose(jnp.sum(w, axis=1), 1.0, atol=2e-3))

    # check against the pure-JAX reference of the original module semantics
    iz_ref, tz_ref, w_ref = socialdec_ref(image_x, text_x, params)
    assert bool(jnp.allclose(image_z, iz_ref, atol=1e-4))
    assert bool(jnp.allclose(text_z, tz_ref, atol=1e-4))
    assert bool(jnp.allclose(w, w_ref, atol=2e-3))

    print("KERNEL_OK")
</pallas_src>

<mosaic_0001>
module attributes {stable_mosaic.version = 11 : i64} {
  func.func @socialdec_kernel(%arg0: i32, %arg1: memref<8x32xf32, #tpu.memory_space<vmem>>, %arg2: memref<32x20xf32, #tpu.memory_space<vmem>>, %arg3: memref<1x20xf32, #tpu.memory_space<vmem>>, %arg4: memref<20x50xf32, #tpu.memory_space<vmem>>, %arg5: memref<1x50xf32, #tpu.memory_space<vmem>>, %arg6: memref<1x50xf32, #tpu.memory_space<vmem>>, %arg7: memref<50x20xf32, #tpu.memory_space<vmem>>, %arg8: memref<1x20xf32, #tpu.memory_space<vmem>>, %arg9: memref<1x20xf32, #tpu.memory_space<vmem>>, %arg10: memref<20x2xf32, #tpu.memory_space<vmem>>, %arg11: memref<1x2xf32, #tpu.memory_space<vmem>>, %arg12: memref<8x20xf32, #tpu.memory_space<vmem>>, %arg13: memref<8x2xf32, #tpu.memory_space<vmem>>) attributes {dimension_semantics = [#tpu.dimension_semantics<parallel>], iteration_bounds = array<i64: 1>, scalar_prefetch = 0 : i64, scratch_operands = 0 : i64, tpu.core_type = #tpu.core_type<tc>, window_params = [{transform_indices = @transform_0, window_bounds = array<i64: 8, 32>}, {pipeline_mode = #tpu.pipeline_mode<synchronous>, transform_indices = @transform_1, window_bounds = array<i64: 32, 20>}, {pipeline_mode = #tpu.pipeline_mode<synchronous>, transform_indices = @transform_2, window_bounds = array<i64: 1, 20>}, {pipeline_mode = #tpu.pipeline_mode<synchronous>, transform_indices = @transform_3, window_bounds = array<i64: 20, 50>}, {pipeline_mode = #tpu.pipeline_mode<synchronous>, transform_indices = @transform_4, window_bounds = array<i64: 1, 50>}, {pipeline_mode = #tpu.pipeline_mode<synchronous>, transform_indices = @transform_5, window_bounds = array<i64: 1, 50>}, {pipeline_mode = #tpu.pipeline_mode<synchronous>, transform_indices = @transform_6, window_bounds = array<i64: 50, 20>}, {pipeline_mode = #tpu.pipeline_mode<synchronous>, transform_indices = @transform_7, window_bounds = array<i64: 1, 20>}, {pipeline_mode = #tpu.pipeline_mode<synchronous>, transform_indices = @transform_8, window_bounds = array<i64: 1, 20>}, {pipeline_mode = #tpu.pipeline_mode<synchronous>, transform_indices = @transform_9, window_bounds = array<i64: 20, 2>}, {pipeline_mode = #tpu.pipeline_mode<synchronous>, transform_indices = @transform_10, window_bounds = array<i64: 1, 2>}, {transform_indices = @transform_11, window_bounds = array<i64: 8, 20>}, {transform_indices = @transform_12, window_bounds = array<i64: 8, 2>}]} {
    %c0 = arith.constant 0 : index
    %c0_0 = arith.constant 0 : index
    %0 = vector.load %arg1[%c0, %c0_0] : memref<8x32xf32, #tpu.memory_space<vmem>>, vector<8x32xf32>
    %c0_1 = arith.constant 0 : index
    %c0_2 = arith.constant 0 : index
    %1 = vector.load %arg2[%c0_1, %c0_2] : memref<32x20xf32, #tpu.memory_space<vmem>>, vector<32x20xf32>
    %cst = arith.constant dense<0.000000e+00> : vector<8x20xf32>
    %2 = tpu.matmul %0, %1, %cst {dimension_numbers = #tpu.dot_dimension_numbers<[1], [0], [0], [1], [0, 0, 1, 1], [], []>} : vector<8x32xf32>, vector<32x20xf32>, vector<8x20xf32> -> vector<8x20xf32>
    %c0_3 = arith.constant 0 : index
    %c0_4 = arith.constant 0 : index
    %3 = vector.load %arg3[%c0_3, %c0_4] : memref<1x20xf32, #tpu.memory_space<vmem>>, vector<1x20xf32>
    %4 = vector.broadcast %3 : vector<1x20xf32> to vector<8x20xf32>
    %5 = arith.addf %2, %4 : vector<8x20xf32>
    %c0_5 = arith.constant 0 : index
    %c0_6 = arith.constant 0 : index
    %6 = vector.load %arg12[%c0_5, %c0_6] : memref<8x20xf32, #tpu.memory_space<vmem>>, vector<8x20xf32>
    tpu.vector_store %arg12[%c0_5, %c0_6], %5 {strides = array<i32>} : memref<8x20xf32, #tpu.memory_space<vmem>>, vector<8x20xf32>,
    %7 = tpu.iota {dimensions = array<i32: 1>} : vector<1x20xi32>
    %c10_i32 = arith.constant 10 : i32
    %8 = vector.broadcast %c10_i32 : i32 to vector<1x20xi32>
    %9 = arith.cmpi slt, %7, %8 : vector<1x20xi32>
    %10 = arith.mulf %5, %5 : vector<8x20xf32>
    %cst_7 = arith.constant 0.000000e+00 : f32
    %11 = vector.shape_cast %9 : vector<1x20xi1> to vector<1x20xi1>
    %12 = vector.broadcast %11 : vector<1x20xi1> to vector<8x20xi1>
    %13 = vector.broadcast %cst_7 : f32 to vector<8x20xf32>
    %14 = arith.select %12, %10, %13 : vector<8x20xi1>, vector<8x20xf32>
    %cst_8 = arith.constant dense<0.000000e+00> : vector<8xf32>
    %15 = vector.multi_reduction <add>, %14, %cst_8 [1] : vector<8x20xf32> to vector<8xf32>
    %16 = vector.shape_cast %15 : vector<8xf32> to vector<8x1xf32>
    %cst_9 = arith.constant dense<0.000000e+00> : vector<8xf32>
    %17 = vector.multi_reduction <add>, %10, %cst_9 [1] : vector<8x20xf32> to vector<8xf32>
    %18 = vector.shape_cast %17 : vector<8xf32> to vector<8x1xf32>
    %19 = arith.subf %18, %16 : vector<8x1xf32>
    %cst_10 = arith.constant 1.000000e-24 : f32
    %20 = vector.broadcast %cst_10 : f32 to vector<8x1xf32>
    %21 = arith.maximumf %16, %20 : vector<8x1xf32>
    %22 = math.rsqrt %21 : vector<8x1xf32>
    %cst_11 = arith.constant 1.000000e-24 : f32
    %23 = vector.broadcast %cst_11 : f32 to vector<8x1xf32>
    %24 = arith.maximumf %19, %23 : vector<8x1xf32>
    %25 = math.rsqrt %24 : vector<8x1xf32>
    %26 = vector.shape_cast %9 : vector<1x20xi1> to vector<1x20xi1>
    %27 = vector.broadcast %26 : vector<1x20xi1> to vector<8x20xi1>
    %28 = vector.shape_cast %22 : vector<8x1xf32> to vector<8x1xf32>
    %29 = vector.broadcast %28 : vector<8x1xf32> to vector<8x20xf32>
    %30 = vector.shape_cast %25 : vector<8x1xf32> to vector<8x1xf32>
    %31 = vector.broadcast %30 : vector<8x1xf32> to vector<8x20xf32>
    %32 = arith.select %27, %29, %31 : vector<8x20xi1>, vector<8x20xf32>
    %33 = arith.mulf %5, %32 : vector<8x20xf32>
    %c0_12 = arith.constant 0 : index
    %c0_13 = arith.constant 0 : index
    %34 = vector.load %arg4[%c0_12, %c0_13] : memref<20x50xf32, #tpu.memory_space<vmem>>, vector<20x50xf32>
    %cst_14 = arith.constant dense<0.000000e+00> : vector<8x50xf32>
    %35 = tpu.matmul %33, %34, %cst_14 {dimension_numbers = #tpu.dot_dimension_numbers<[1], [0], [0], [1], [0, 0, 1, 1], [], []>} : vector<8x20xf32>, vector<20x50xf32>, vector<8x50xf32> -> vector<8x50xf32>
    %c0_15 = arith.constant 0 : index
    %c0_16 = arith.constant 0 : index
    %36 = vector.load %arg5[%c0_15, %c0_16] : memref<1x50xf32, #tpu.memory_space<vmem>>, vector<1x50xf32>
    %37 = vector.broadcast %36 : vector<1x50xf32> to vector<8x50xf32>
    %38 = arith.mulf %35, %37 : vector<8x50xf32>
    %c0_17 = arith.constant 0 : index
    %c0_18 = arith.constant 0 : index
    %39 = vector.load %arg6[%c0_17, %c0_18] : memref<1x50xf32, #tpu.memory_space<vmem>>, vector<1x50xf32>
    %40 = vector.broadcast %39 : vector<1x50xf32> to vector<8x50xf32>
    %41 = arith.addf %38, %40 : vector<8x50xf32>
    %cst_19 = arith.constant 0.000000e+00 : f32
    %42 = vector.broadcast %cst_19 : f32 to vector<8x50xf32>
    %43 = arith.maximumf %41, %42 : vector<8x50xf32>
    %c0_20 = arith.constant 0 : index
    %c0_21 = arith.constant 0 : index
    %44 = vector.load %arg7[%c0_20, %c0_21] : memref<50x20xf32, #tpu.memory_space<vmem>>, vector<50x20xf32>
    %cst_22 = arith.constant dense<0.000000e+00> : vector<8x20xf32>
    %45 = tpu.matmul %43, %44, %cst_22 {dimension_numbers = #tpu.dot_dimension_numbers<[1], [0], [0], [1], [0, 0, 1, 1], [], []>} : vector<8x50xf32>, vector<50x20xf32>, vector<8x20xf32> -> vector<8x20xf32>
    %c0_23 = arith.constant 0 : index
    %c0_24 = arith.constant 0 : index
    %46 = vector.load %arg8[%c0_23, %c0_24] : memref<1x20xf32, #tpu.memory_space<vmem>>, vector<1x20xf32>
    %47 = vector.broadcast %46 : vector<1x20xf32> to vector<8x20xf32>
    %48 = arith.mulf %45, %47 : vector<8x20xf32>
    %c0_25 = arith.constant 0 : index
    %c0_26 = arith.constant 0 : index
    %49 = vector.load %arg9[%c0_25, %c0_26] : memref<1x20xf32, #tpu.memory_space<vmem>>, vector<1x20xf32>
    %50 = vector.broadcast %49 : vector<1x20xf32> to vector<8x20xf32>
    %51 = arith.addf %48, %50 : vector<8x20xf32>
    %cst_27 = arith.constant 0.000000e+00 : f32
    %52 = vector.broadcast %cst_27 : f32 to vector<8x20xf32>
    %53 = arith.maximumf %51, %52 : vector<8x20xf32>
    %c0_28 = arith.constant 0 : index
    %c0_29 = arith.constant 0 : index
    %54 = vector.load %arg10[%c0_28, %c0_29] : memref<20x2xf32, #tpu.memory_space<vmem>>, vector<20x2xf32>
    %cst_30 = arith.constant dense<0.000000e+00> : vector<8x2xf32>
    %55 = tpu.matmul %53, %54, %cst_30 {dimension_numbers = #tpu.dot_dimension_numbers<[1], [0], [0], [1], [0, 0, 1, 1], [], []>} : vector<8x20xf32>, vector<20x2xf32>, vector<8x2xf32> -> vector<8x2xf32>
    %c0_31 = arith.constant 0 : index
    %c0_32 = arith.constant 0 : index
    %56 = vector.load %arg11[%c0_31, %c0_32] : memref<1x2xf32, #tpu.memory_space<vmem>>, vector<1x2xf32>
    %57 = vector.broadcast %56 : vector<1x2xf32> to vector<8x2xf32>
    %58 = arith.addf %55, %57 : vector<8x2xf32>
    %59 = arith.negf %58 : vector<8x2xf32>
    %60 = math.exp %59 : vector<8x2xf32>
    %cst_33 = arith.constant 1.000000e+00 : f32
    %61 = vector.broadcast %cst_33 : f32 to vector<8x2xf32>
    %62 = arith.addf %61, %60 : vector<8x2xf32>
    %63 = arith.divf %61, %62 : vector<8x2xf32>
    %cst_34 = arith.constant 1.000000e+00 : f32
    %64 = vector.broadcast %cst_34 : f32 to vector<8x2xf32>
    %65 = arith.mulf %63, %64 : vector<8x2xf32>
    %66 = math.exp %65 : vector<8x2xf32>
    %cst_35 = arith.constant dense<0.000000e+00> : vector<8xf32>
    %67 = vector.multi_reduction <add>, %66, %cst_35 [1] : vector<8x2xf32> to vector<8xf32>
    %68 = vector.shape_cast %67 : vector<8xf32> to vector<8x1xf32>
    %69 = tpu.reciprocal %68 {approx = true} : vector<8x1xf32> -> vector<8x1xf32>
    %70 = vector.broadcast %69 : vector<8x1xf32> to vector<8x2xf32>
    %71 = arith.mulf %66, %70 : vector<8x2xf32>
    %c0_36 = arith.constant 0 : index
    %c0_37 = arith.constant 0 : index
    %72 = vector.load %arg13[%c0_36, %c0_37] : memref<8x2xf32, #tpu.memory_space<vmem>>, vector<8x2xf32>
    tpu.vector_store %arg13[%c0_36, %c0_37], %71 {strides = array<i32>} : memref<8x2xf32, #tpu.memory_space<vmem>>, vector<8x2xf32>,
    return
  }
  func.func @transform_0(%arg0: i32) -> (i32, i32) {
    %c0_i32 = arith.constant 0 : i32
    %c0_i32_0 = arith.constant 0 : i32
    return %arg0, %c0_i32 : i32, i32
  }
  func.func @transform_1(%arg0: i32) -> (i32, i32) {
    %c0_i32 = arith.constant 0 : i32
    %c0_i32_0 = arith.constant 0 : i32
    %c0_i32_1 = arith.constant 0 : i32
    return %c0_i32, %c0_i32_0 : i32, i32
  }
  func.func @transform_2(%arg0: i32) -> (i32, i32) {
    %c0_i32 = arith.constant 0 : i32
    %c0_i32_0 = arith.constant 0 : i32
    %c0_i32_1 = arith.constant 0 : i32
    return %c0_i32, %c0_i32_0 : i32, i32
  }
  func.func @transform_3(%arg0: i32) -> (i32, i32) {
    %c0_i32 = arith.constant 0 : i32
    %c0_i32_0 = arith.constant 0 : i32
    %c0_i32_1 = arith.constant 0 : i32
    return %c0_i32, %c0_i32_0 : i32, i32
  }
  func.func @transform_4(%arg0: i32) -> (i32, i32) {
    %c0_i32 = arith.constant 0 : i32
    %c0_i32_0 = arith.constant 0 : i32
    %c0_i32_1 = arith.constant 0 : i32
    return %c0_i32, %c0_i32_0 : i32, i32
  }
  func.func @transform_5(%arg0: i32) -> (i32, i32) {
    %c0_i32 = arith.constant 0 : i32
    %c0_i32_0 = arith.constant 0 : i32
    %c0_i32_1 = arith.constant 0 : i32
    return %c0_i32, %c0_i32_0 : i32, i32
  }
  func.func @transform_6(%arg0: i32) -> (i32, i32) {
    %c0_i32 = arith.constant 0 : i32
    %c0_i32_0 = arith.constant 0 : i32
    %c0_i32_1 = arith.constant 0 : i32
    return %c0_i32, %c0_i32_0 : i32, i32
  }
  func.func @transform_7(%arg0: i32) -> (i32, i32) {
    %c0_i32 = arith.constant 0 : i32
    %c0_i32_0 = arith.constant 0 : i32
    %c0_i32_1 = arith.constant 0 : i32
    return %c0_i32, %c0_i32_0 : i32, i32
  }
  func.func @transform_8(%arg0: i32) -> (i32, i32) {
    %c0_i32 = arith.constant 0 : i32
    %c0_i32_0 = arith.constant 0 : i32
    %c0_i32_1 = arith.constant 0 : i32
    return %c0_i32, %c0_i32_0 : i32, i32
  }
  func.func @transform_9(%arg0: i32) -> (i32, i32) {
    %c0_i32 = arith.constant 0 : i32
    %c0_i32_0 = arith.constant 0 : i32
    %c0_i32_1 = arith.constant 0 : i32
    return %c0_i32, %c0_i32_0 : i32, i32
  }
  func.func @transform_10(%arg0: i32) -> (i32, i32) {
    %c0_i32 = arith.constant 0 : i32
    %c0_i32_0 = arith.constant 0 : i32
    %c0_i32_1 = arith.constant 0 : i32
    return %c0_i32, %c0_i32_0 : i32, i32
  }
  func.func @transform_11(%arg0: i32) -> (i32, i32) {
    %c0_i32 = arith.constant 0 : i32
    %c0_i32_0 = arith.constant 0 : i32
    return %arg0, %c0_i32 : i32, i32
  }
  func.func @transform_12(%arg0: i32) -> (i32, i32) {
    %c0_i32 = arith.constant 0 : i32
    %c0_i32_0 = arith.constant 0 : i32
    return %arg0, %c0_i32 : i32, i32
  }
}

</mosaic_0001>

<llo_original>
// kernel: tpu_custom_call.1
$region0: #{tpu_custom_call.1}
  #allocation0 [shape = 'u32[]', space=smem, size = 0x4, offset = 0x4, fixed_abs, tag = 'smem constant byte address 0x4 - core index']
  #allocation1 [shape = 'u32[144,128]{1,0:T(1,128)}', space=vmem, size = 0x12000, scoped, tag = 'internal scratch']
  %s0 = inlined_call_operand.vmem [shape: f32[8,32], index: 0, kind: input, shape index: {}]
  %s1 = inlined_call_operand.vmem [shape: f32[32,20], index: 1, kind: input, shape index: {}]
  %s2 = inlined_call_operand.vmem [shape: f32[1,20], index: 2, kind: input, shape index: {}]
  %s3 = inlined_call_operand.vmem [shape: f32[20,50], index: 3, kind: input, shape index: {}]
  %s4 = inlined_call_operand.vmem [shape: f32[1,50], index: 4, kind: input, shape index: {}]
  %s5 = inlined_call_operand.vmem [shape: f32[1,50], index: 5, kind: input, shape index: {}]
  %s6 = inlined_call_operand.vmem [shape: f32[50,20], index: 6, kind: input, shape index: {}]
  %s7 = inlined_call_operand.vmem [shape: f32[1,20], index: 7, kind: input, shape index: {}]
  %s8 = inlined_call_operand.vmem [shape: f32[1,20], index: 8, kind: input, shape index: {}]
  %s9 = inlined_call_operand.vmem [shape: f32[20,2], index: 9, kind: input, shape index: {}]
  %s10 = inlined_call_operand.vmem [shape: f32[1,2], index: 10, kind: input, shape index: {}]
  %s11 = inlined_call_operand.hbm [shape: f32[8,20], index: 11, kind: output, shape index: {0}]
  %s12 = inlined_call_operand.vmem [shape: f32[8,2], index: 12, kind: output, shape index: {1}]
  %13 = xla_tuple %s11, %s12
  %s14 = sld [smem:[#allocation0]]
  $region62: #{tpu_custom_call.1} parent=0
    _
  %s16 = ssub.s32 1, %s14
  %s17 = scalar_select 0, %s16, %s14
  $region1: #{tpu_custom_call.1} parent=0
    #allocation2 [shape = 'u8[4096]{0}', space=vmem, size = 0x1000, scoped, tag = 'output window, operand 0, single buffered']
    #allocation3 [shape = 's32[1]{0}', space=sflag, size = 0x4, scoped, tag = 'scoped memory for tpu_custom_call.1']
    %18 = vsyncpa [#allocation3], 0
    // Predicated region
    $region2: #{tpu_custom_call.1} parent=1 // pred_check
      _
    $region3: #{tpu_custom_call.1} parent=1 // pred_check_branch
      %20 = sbr.rel (0) target = $region5
    $region4: #{tpu_custom_call.1} parent=1 // pred_region
      _
    $region5: #{tpu_custom_call.1} parent=1 // pred_fallthru
      _
    // Predicated region
    $region6: #{tpu_custom_call.1} parent=1 // pred_check
      _
    $region7: #{tpu_custom_call.1} parent=1 // pred_check_branch
      %22 = sbr.rel (0) target = $region9
    $region8: #{tpu_custom_call.1} parent=1 // pred_region
      _
    $region9: #{tpu_custom_call.1} parent=1 // pred_fallthru
      _
    // Predicated region
    $region10: #{tpu_custom_call.1} parent=1 // pred_check
      _
    $region11: #{tpu_custom_call.1} parent=1 // pred_check_branch
      %24 = sbr.rel (0) target = $region13
    $region12: #{tpu_custom_call.1} parent=1 // pred_region
      _
    $region13: #{tpu_custom_call.1} parent=1 // pred_fallthru
      _
    // Predicated region
    $region14: #{tpu_custom_call.1} parent=1 // pred_check
      _
    $region15: #{tpu_custom_call.1} parent=1 // pred_check_branch
      %26 = sbr.rel (0) target = $region17
    $region16: #{tpu_custom_call.1} parent=1 // pred_region
      _
    $region17: #{tpu_custom_call.1} parent=1 // pred_fallthru
      _
    // Predicated region
    $region18: #{tpu_custom_call.1} parent=1 // pred_check
      _
    $region19: #{tpu_custom_call.1} parent=1 // pred_check_branch
      %28 = sbr.rel (0) target = $region21
    $region20: #{tpu_custom_call.1} parent=1 // pred_region
      _
    $region21: #{tpu_custom_call.1} parent=1 // pred_fallthru
      _
    // Predicated region
    $region22: #{tpu_custom_call.1} parent=1 // pred_check
      _
    $region23: #{tpu_custom_call.1} parent=1 // pred_check_branch
      %30 = sbr.rel (0) target = $region25
    $region24: #{tpu_custom_call.1} parent=1 // pred_region
      _
    $region25: #{tpu_custom_call.1} parent=1 // pred_fallthru
      _
    // Predicated region
    $region26: #{tpu_custom_call.1} parent=1 // pred_check
      _
    $region27: #{tpu_custom_call.1} parent=1 // pred_check_branch
      %32 = sbr.rel (0) target = $region29
    $region28: #{tpu_custom_call.1} parent=1 // pred_region
      _
    $region29: #{tpu_custom_call.1} parent=1 // pred_fallthru
      _
    // Predicated region
    $region30: #{tpu_custom_call.1} parent=1 // pred_check
      _
    $region31: #{tpu_custom_call.1} parent=1 // pred_check_branch
      %34 = sbr.rel (0) target = $region33
    $region32: #{tpu_custom_call.1} parent=1 // pred_region
      _
    $region33: #{tpu_custom_call.1} parent=1 // pred_fallthru
      _
    // Predicated region
    $region34: #{tpu_custom_call.1} parent=1 // pred_check
      _
    $region35: #{tpu_custom_call.1} parent=1 // pred_check_branch
      %36 = sbr.rel (0) target = $region37
    $region36: #{tpu_custom_call.1} parent=1 // pred_region
      _
    $region37: #{tpu_custom_call.1} parent=1 // pred_fallthru
      _
    // Predicated region
    $region38: #{tpu_custom_call.1} parent=1 // pred_check
      _
    $region39: #{tpu_custom_call.1} parent=1 // pred_check_branch
      %38 = sbr.rel (0) target = $region41
    $region40: #{tpu_custom_call.1} parent=1 // pred_region
      _
    $region41: #{tpu_custom_call.1} parent=1 // pred_fallthru
      _
    // Predicated region
    $region42: #{tpu_custom_call.1} parent=1 // pred_check
      _
    $region43: #{tpu_custom_call.1} parent=1 // pred_check_branch
      %40 = sbr.rel (0) target = $region45
    $region44: #{tpu_custom_call.1} parent=1 // pred_region
      _
    $region45: #{tpu_custom_call.1} parent=1 // pred_fallthru
      _
    %v41 = vld [vmem:[%s0] sm:$0xff]
    %v42 = vld [vmem:[%s1] sm:$0xff]
    %v43 = vld [vmem:[%s1 + $0x8] sm:$0xff]
    %v44 = vld [vmem:[%s1 + $0x10] sm:$0xff]
    %v45 = vld [vmem:[%s1 + $0x18] sm:$0xff]
    %v46 = vld [vmem:[%s2] sm:$0x1]
    %v48 = vlaneseq
    %v49 = vshrl.u32 %v48, 7
    %v50 = vsub.s32 0, %v49
    %v51 = vrot.slane %v46, %v50
    %vm53 = vcmask 261120
    %v55 = vsel %vm53, %v41, 0
    %57 = vmatprep.subr.mxu0 0.0
    %58 = vmatpush1.msra.mxu0 %v42
    %59 = vmatprep.subr.mxu0 0.0
    %60 = vmatpush1.msra.mxu0 %v43
    %61 = vmatprep.subr.mxu0 0.0
    %62 = vmatpush1.msra.mxu0 %v44
    %63 = vmatprep.subr.mxu0 0.0
    %64 = vmatpush1.msra.mxu0 %v45
    %65 = vmatprep.subr.mxu0 0.0
    %66 = vmatpush1.msra.mxu0 0.0
    %67 = vmatprep.subr.mxu0 0.0
    %68 = vmatpush1.msra.mxu0 0.0
    %69 = vmatprep.subr.mxu0 0.0
    %70 = vmatpush1.msra.mxu0 0.0
    %71 = vmatprep.subr.mxu0 0.0
    %72 = vmatpush1.msra.mxu0 0.0
    %73 = vmatprep.subr.mxu0 0.0
    %74 = vmatpush1.msra.mxu0 0.0
    %75 = vmatprep.subr.mxu0 0.0
    %76 = vmatpush1.msra.mxu0 0.0
    %77 = vmatprep.subr.mxu0 0.0
    %78 = vmatpush1.msra.mxu0 0.0
    %79 = vmatprep.subr.mxu0 0.0
    %80 = vmatpush1.msra.mxu0 0.0
    %81 = vmatprep.subr.mxu0 0.0
    %82 = vmatpush1.msra.mxu0 0.0
    %83 = vmatprep.subr.mxu0 0.0
    %84 = vmatpush1.msra.mxu0 0.0
    %85 = vmatprep.subr.mxu0 0.0
    %86 = vmatpush1.msra.mxu0 0.0
    %87 = vmatprep.subr.mxu0 0.0
    %88 = vmatpush1.msra.mxu0 0.0
    %89 = vmatprep.subr.mxu0 0.0
    %90 = vmatpush1.msra.mxu0 0.0
    %91 = vmatprep.subr.mxu0 0.0
    %92 = vmatpush1.msra.mxu0 0.0
    %93 = vmatprep.subr.mxu0 0.0
    %94 = vmatpush1.msra.mxu0 0.0
    %95 = vmatprep.subr.mxu0 0.0
    %96 = vmatpush1.msra.mxu0 0.0
    %97 = vmatprep.subr.mxu0 0.0
    %98 = vmatpush1.msra.mxu0 0.0
    %99 = vmatprep.subr.mxu0 0.0
    %100 = vmatpush1.msra.mxu0 0.0
    %101 = vmatprep.subr.mxu0 0.0
    %102 = vmatpush1.msra.mxu0 0.0
    %103 = vmatprep.subr.mxu0 0.0
    %104 = vmatpush1.msra.mxu0 0.0
    %105 = vmatprep.subr.mxu0 0.0
    %106 = vmatpush1.msra.mxu0 0.0
    %107 = vmatprep.subr.mxu0 0.0
    %108 = vmatpush1.msra.mxu0 0.0
    %109 = vmatprep.subr.mxu0 0.0
    %110 = vmatpush1.msra.mxu0 0.0
    %111 = vmatprep.subr.mxu0 0.0
    %112 = vmatpush1.msra.mxu0 0.0
    %113 = vmatprep.subr.mxu0 0.0
    %114 = vmatpush1.msra.mxu0 0.0
    %115 = vmatprep.subr.mxu0 0.0
    %116 = vmatpush1.msra.mxu0 0.0
    %117 = vmatprep.subr.mxu0 0.0
    %118 = vmatpush1.msra.mxu0 0.0
    %119 = vmatprep.subr.mxu0 0.0
    %120 = vmatpush1.msra.mxu0 0.0
    %121 = vmatprep.mubr.f32.mxu0 0.0
    %122 = vmatmul.mubr.f32.gmra.mrb[0].mxu0 %v55
    %v123 = vpop.f32.mrb[0].mxu0
    %v124 = vadd.f32 %v51, %v123
    %v125 = vpop.f32.mrb[0].mxu0
    %126 = vdwg.mxu0
    %vm127 = vcmask 162816
    %128 = vst.msk [vmem:[#allocation2] sm:$0xff] %vm127, %v124
    %v129 = vlaneseq
    %v130 = vand.u32 %v129, 127
    %vm131 = vcmp.lt.s32.totalorder %v130, 10
    %v132 = vmul.f32 %v124, %v124
    %v133 = vsel %vm131, 1, 0
    %vm134 = vcmp.eq.s32.totalorder %v133, 1
    %v135 = vsel %vm134, %v132, 0.0
    %v136 = vsel %vm127, %v135, 0.0
    %137 = vadd.xlane.f32.xlu0 %v136
    %v138 = vpop.xlane.xlu0 %137
    %v139 = vsel %vm127, %v132, 0.0
    %140 = vadd.xlane.f32.xlu0 %v139
    %v141 = vpop.xlane.xlu0 %140
    %v142 = vsub.f32 %v141, %v138
    %v143 = vmax.f32 %v138, 1e-24
    %v144 = vrsqrt.pop %v143
    %v145 = vmax.f32 %v142, 1e-24
    %v146 = vrsqrt.pop %v145
    %v147 = vsel %vm134, %v144, %v146
    %v148 = vmul.f32 %v124, %v147
    %v149 = vld [vmem:[%s3] sm:$0xff]
    %v150 = vld [vmem:[%s3 + $0x8] sm:$0xff]
    %v151 = vld [vmem:[%s3 + $0x10] sm:$0xf]
    %v153 = vsel %vm127, %v148, 0
    %vm155 = vcmask 1043456
    %v157 = vsel %vm155, %v151, 0
    %159 = vmatprep.subr.mxu0 0.0
    %160 = vmatpush1.msra.mxu0 %v149
    %161 = vmatprep.subr.mxu0 0.0
    %162 = vmatpush1.msra.mxu0 %v150
    %163 = vmatprep.subr.mxu0 0.0
    %164 = vmatpush1.msra.mxu0 %v157
    %165 = vmatprep.subr.mxu0 0.0
    %166 = vmatpush1.msra.mxu0 0.0
    %167 = vmatprep.subr.mxu0 0.0
    %168 = vmatpush1.msra.mxu0 0.0
    %169 = vmatprep.subr.mxu0 0.0
    %170 = vmatpush1.msra.mxu0 0.0
    %171 = vmatprep.subr.mxu0 0.0
    %172 = vmatpush1.msra.mxu0 0.0
    %173 = vmatprep.subr.mxu0 0.0
    %174 = vmatpush1.msra.mxu0 0.0
    %175 = vmatprep.subr.mxu0 0.0
    %176 = vmatpush1.msra.mxu0 0.0
    %177 = vmatprep.subr.mxu0 0.0
    %178 = vmatpush1.msra.mxu0 0.0
    %179 = vmatprep.subr.mxu0 0.0
    %180 = vmatpush1.msra.mxu0 0.0
    %181 = vmatprep.subr.mxu0 0.0
    %182 = vmatpush1.msra.mxu0 0.0
    %183 = vmatprep.subr.mxu0 0.0
    %184 = vmatpush1.msra.mxu0 0.0
    %185 = vmatprep.subr.mxu0 0.0
    %186 = vmatpush1.msra.mxu0 0.0
    %187 = vmatprep.subr.mxu0 0.0
    %188 = vmatpush1.msra.mxu0 0.0
    %189 = vmatprep.subr.mxu0 0.0
    %190 = vmatpush1.msra.mxu0 0.0
    %191 = vmatprep.subr.mxu0 0.0
    %192 = vmatpush1.msra.mxu0 0.0
    %193 = vmatprep.subr.mxu0 0.0
    %194 = vmatpush1.msra.mxu0 0.0
    %195 = vmatprep.subr.mxu0 0.0
    %196 = vmatpush1.msra.mxu0 0.0
    %197 = vmatprep.subr.mxu0 0.0
    %198 = vmatpush1.msra.mxu0 0.0
    %199 = vmatprep.subr.mxu0 0.0
    %200 = vmatpush1.msra.mxu0 0.0
    %201 = vmatprep.subr.mxu0 0.0
    %202 = vmatpush1.msra.mxu0 0.0
    %203 = vmatprep.subr.mxu0 0.0
    %204 = vmatpush1.msra.mxu0 0.0
    %205 = vmatprep.subr.mxu0 0.0
    %206 = vmatpush1.msra.mxu0 0.0
    %207 = vmatprep.subr.mxu0 0.0
    %208 = vmatpush1.msra.mxu0 0.0
    %209 = vmatprep.subr.mxu0 0.0
    %210 = vmatpush1.msra.mxu0 0.0
    %211 = vmatprep.subr.mxu0 0.0
    %212 = vmatpush1.msra.mxu0 0.0
    %213 = vmatprep.subr.mxu0 0.0
    %214 = vmatpush1.msra.mxu0 0.0
    %215 = vmatprep.subr.mxu0 0.0
    %216 = vmatpush1.msra.mxu0 0.0
    %217 = vmatprep.subr.mxu0 0.0
    %218 = vmatpush1.msra.mxu0 0.0
    %219 = vmatprep.subr.mxu0 0.0
    %220 = vmatpush1.msra.mxu0 0.0
    %221 = vmatprep.subr.mxu0 0.0
    %222 = vmatpush1.msra.mxu0 0.0
    %223 = vmatprep.mubr.f32.mxu0 0.0
    %224 = vmatmul.mubr.f32.gmra.mrb[0].mxu0 %v153
    %v225 = vpop.f32.mrb[0].mxu0
    %v226 = vadd.f32 0.0, %v225
    %v227 = vpop.f32.mrb[0].mxu0
    %228 = vdwg.mxu0
    %v229 = vld [vmem:[%s4] sm:$0x1]
    %v231 = vlaneseq
    %v232 = vshrl.u32 %v231, 7
    %v233 = vsub.s32 0, %v232
    %v234 = vrot.slane %v229, %v233
    %v236 = vmul.f32 %v226, %v234
    %v237 = vld [vmem:[%s5] sm:$0x1]
    %v239 = vlaneseq
    %v240 = vshrl.u32 %v239, 7
    %v241 = vsub.s32 0, %v240
    %v242 = vrot.slane %v237, %v241
    %v244 = vadd.f32 %v236, %v242
    %v245 = vmax.f32 %v244, 0.0
    %v246 = vld [vmem:[%s6] sm:$0xff]
    %v247 = vld [vmem:[%s6 + $0x8] sm:$0xff]
    %v248 = vld [vmem:[%s6 + $0x10] sm:$0xff]
    %v249 = vld [vmem:[%s6 + $0x18] sm:$0xff]
    %v250 = vld [vmem:[%s6 + $0x20] sm:$0xff]
    %v251 = vld [vmem:[%s6 + $0x28] sm:$0xff]
    %v252 = vld [vmem:[%s6 + $0x30] sm:$0x3]
    %vm253 = vcmask 408576
    %v255 = vsel %vm253, %v245, 0
    %vm257 = vcmask 1041408
    %v259 = vsel %vm257, %v252, 0
    %261 = vmatprep.subr.mxu0 0.0
    %262 = vmatpush1.msra.mxu0 %v246
    %263 = vmatprep.subr.mxu0 0.0
    %264 = vmatpush1.msra.mxu0 %v247
    %265 = vmatprep.subr.mxu0 0.0
    %266 = vmatpush1.msra.mxu0 %v248
    %267 = vmatprep.subr.mxu0 0.0
    %268 = vmatpush1.msra.mxu0 %v249
    %269 = vmatprep.subr.mxu0 0.0
    %270 = vmatpush1.msra.mxu0 %v250
    %271 = vmatprep.subr.mxu0 0.0
    %272 = vmatpush1.msra.mxu0 %v251
    %273 = vmatprep.subr.mxu0 0.0
    %274 = vmatpush1.msra.mxu0 %v259
    %275 = vmatprep.subr.mxu0 0.0
    %276 = vmatpush1.msra.mxu0 0.0
    %277 = vmatprep.subr.mxu0 0.0
    %278 = vmatpush1.msra.mxu0 0.0
    %279 = vmatprep.subr.mxu0 0.0
    %280 = vmatpush1.msra.mxu0 0.0
    %281 = vmatprep.subr.mxu0 0.0
    %282 = vmatpush1.msra.mxu0 0.0
    %283 = vmatprep.subr.mxu0 0.0
    %284 = vmatpush1.msra.mxu0 0.0
    %285 = vmatprep.subr.mxu0 0.0
    %286 = vmatpush1.msra.mxu0 0.0
    %287 = vmatprep.subr.mxu0 0.0
    %288 = vmatpush1.msra.mxu0 0.0
    %289 = vmatprep.subr.mxu0 0.0
    %290 = vmatpush1.msra.mxu0 0.0
    %291 = vmatprep.subr.mxu0 0.0
    %292 = vmatpush1.msra.mxu0 0.0
    %293 = vmatprep.subr.mxu0 0.0
    %294 = vmatpush1.msra.mxu0 0.0
    %295 = vmatprep.subr.mxu0 0.0
    %296 = vmatpush1.msra.mxu0 0.0
    %297 = vmatprep.subr.mxu0 0.0
    %298 = vmatpush1.msra.mxu0 0.0
    %299 = vmatprep.subr.mxu0 0.0
    %300 = vmatpush1.msra.mxu0 0.0
    %301 = vmatprep.subr.mxu0 0.0
    %302 = vmatpush1.msra.mxu0 0.0
    %303 = vmatprep.subr.mxu0 0.0
    %304 = vmatpush1.msra.mxu0 0.0
    %305 = vmatprep.subr.mxu0 0.0
    %306 = vmatpush1.msra.mxu0 0.0
    %307 = vmatprep.subr.mxu0 0.0
    %308 = vmatpush1.msra.mxu0 0.0
    %309 = vmatprep.subr.mxu0 0.0
    %310 = vmatpush1.msra.mxu0 0.0
    %311 = vmatprep.subr.mxu0 0.0
    %312 = vmatpush1.msra.mxu0 0.0
    %313 = vmatprep.subr.mxu0 0.0
    %314 = vmatpush1.msra.mxu0 0.0
    %315 = vmatprep.subr.mxu0 0.0
    %316 = vmatpush1.msra.mxu0 0.0
    %317 = vmatprep.subr.mxu0 0.0
    %318 = vmatpush1.msra.mxu0 0.0
    %319 = vmatprep.subr.mxu0 0.0
    %320 = vmatpush1.msra.mxu0 0.0
    %321 = vmatprep.subr.mxu0 0.0
    %322 = vmatpush1.msra.mxu0 0.0
    %323 = vmatprep.subr.mxu0 0.0
    %324 = vmatpush1.msra.mxu0 0.0
    %325 = vmatprep.mubr.f32.mxu0 0.0
    %326 = vmatmul.mubr.f32.gmra.mrb[0].mxu0 %v255
    %v327 = vpop.f32.mrb[0].mxu0
    %v328 = vadd.f32 0.0, %v327
    %v329 = vpop.f32.mrb[0].mxu0
    %330 = vdwg.mxu0
    %v331 = vld [vmem:[%s7] sm:$0x1]
    %v333 = vlaneseq
    %v334 = vshrl.u32 %v333, 7
    %v335 = vsub.s32 0, %v334
    %v336 = vrot.slane %v331, %v335
    %v338 = vmul.f32 %v328, %v336
    %v339 = vld [vmem:[%s8] sm:$0x1]
    %v341 = vlaneseq
    %v342 = vshrl.u32 %v341, 7
    %v343 = vsub.s32 0, %v342
    %v344 = vrot.slane %v339, %v343
    %v346 = vadd.f32 %v338, %v344
    %v347 = vmax.f32 %v346, 0.0
    %v348 = vld [vmem:[%s9] sm:$0xff]
    %v349 = vld [vmem:[%s9 + $0x8] sm:$0xff]
    %v350 = vld [vmem:[%s9 + $0x10] sm:$0xf]
    %v351 = vld [vmem:[%s10] sm:$0x1]
    %v353 = vlaneseq
    %v354 = vshrl.u32 %v353, 7
    %v355 = vsub.s32 0, %v354
    %v356 = vrot.slane %v351, %v355
    %v359 = vsel %vm127, %v347, 0
    %v362 = vsel %vm155, %v350, 0
    %364 = vmatprep.subr.mxu0 0.0
    %365 = vmatpush1.msra.mxu0 %v348
    %366 = vmatprep.subr.mxu0 0.0
    %367 = vmatpush1.msra.mxu0 %v349
    %368 = vmatprep.subr.mxu0 0.0
    %369 = vmatpush1.msra.mxu0 %v362
    %370 = vmatprep.subr.mxu0 0.0
    %371 = vmatpush1.msra.mxu0 0.0
    %372 = vmatprep.subr.mxu0 0.0
    %373 = vmatpush1.msra.mxu0 0.0
    %374 = vmatprep.subr.mxu0 0.0
    %375 = vmatpush1.msra.mxu0 0.0
    %376 = vmatprep.subr.mxu0 0.0
    %377 = vmatpush1.msra.mxu0 0.0
    %378 = vmatprep.subr.mxu0 0.0
    %379 = vmatpush1.msra.mxu0 0.0
    %380 = vmatprep.subr.mxu0 0.0
    %381 = vmatpush1.msra.mxu0 0.0
    %382 = vmatprep.subr.mxu0 0.0
    %383 = vmatpush1.msra.mxu0 0.0
    %384 = vmatprep.subr.mxu0 0.0
    %385 = vmatpush1.msra.mxu0 0.0
    %386 = vmatprep.subr.mxu0 0.0
    %387 = vmatpush1.msra.mxu0 0.0
    %388 = vmatprep.subr.mxu0 0.0
    %389 = vmatpush1.msra.mxu0 0.0
    %390 = vmatprep.subr.mxu0 0.0
    %391 = vmatpush1.msra.mxu0 0.0
    %392 = vmatprep.subr.mxu0 0.0
    %393 = vmatpush1.msra.mxu0 0.0
    %394 = vmatprep.subr.mxu0 0.0
    %395 = vmatpush1.msra.mxu0 0.0
    %396 = vmatprep.subr.mxu0 0.0
    %397 = vmatpush1.msra.mxu0 0.0
    %398 = vmatprep.subr.mxu0 0.0
    %399 = vmatpush1.msra.mxu0 0.0
    %400 = vmatprep.subr.mxu0 0.0
    %401 = vmatpush1.msra.mxu0 0.0
    %402 = vmatprep.subr.mxu0 0.0
    %403 = vmatpush1.msra.mxu0 0.0
    %404 = vmatprep.subr.mxu0 0.0
    %405 = vmatpush1.msra.mxu0 0.0
    %406 = vmatprep.subr.mxu0 0.0
    %407 = vmatpush1.msra.mxu0 0.0
    %408 = vmatprep.subr.mxu0 0.0
    %409 = vmatpush1.msra.mxu0 0.0
    %410 = vmatprep.subr.mxu0 0.0
    %411 = vmatpush1.msra.mxu0 0.0
    %412 = vmatprep.subr.mxu0 0.0
    %413 = vmatpush1.msra.mxu0 0.0
    %414 = vmatprep.subr.mxu0 0.0
    %415 = vmatpush1.msra.mxu0 0.0
    %416 = vmatprep.subr.mxu0 0.0
    %417 = vmatpush1.msra.mxu0 0.0
    %418 = vmatprep.subr.mxu0 0.0
    %419 = vmatpush1.msra.mxu0 0.0
    %420 = vmatprep.subr.mxu0 0.0
    %421 = vmatpush1.msra.mxu0 0.0
    %422 = vmatprep.subr.mxu0 0.0
    %423 = vmatpush1.msra.mxu0 0.0
    %424 = vmatprep.subr.mxu0 0.0
    %425 = vmatpush1.msra.mxu0 0.0
    %426 = vmatprep.subr.mxu0 0.0
    %427 = vmatpush1.msra.mxu0 0.0
    %428 = vmatprep.mubr.f32.mxu0 0.0
    %429 = vmatmul.mubr.f32.gmra.mrb[0].mxu0 %v359
    %v430 = vpop.f32.mrb[0].mxu0
    %v431 = vadd.f32 %v356, %v430
    %v432 = vpop.f32.mrb[0].mxu0
    %433 = vdwg.mxu0
    %v434 = vxor.u32 %v431, 2147483648
    %v435 = vmul.f32 %v434, 1.442695
    %v436 = vpow.pop %v435
    %v437 = vadd.f32 %v436, 1.0
    %v438 = vrcp.pop %v437
    %v439 = vmul.f32 1.0, %v438
    %v440 = vmul.f32 %v439, 1.442695
    %v441 = vpow.pop %v440
    %vm442 = vcmask 15360
    %v443 = vsel %vm442, %v441, 0.0
    %444 = vadd.xlane.f32.xlu0 %v443
    %v445 = vpop.xlane.xlu0 %444
    %v446 = vrcp.pop %v445
    %v447 = vmul.f32 %v441, %v446
    %448 = vst.msk [vmem:[%s12] sm:$0xff] %vm442, %v447
    // Predicated region
    $region46: #{tpu_custom_call.1} parent=1 // pred_check
      _
    $region47: #{tpu_custom_call.1} parent=1 // pred_check_branch
      %450 = sbr.rel (0) target = $region49
    $region48: #{tpu_custom_call.1} parent=1 // pred_region
      %s452 = ssub.s32 128, 128
      %453 = vsyncadd [#allocation3], %s452
      %s455 = sshll.u32 [#allocation2], 4
      %s456 = int_to_ptr.vmem [resolvable:$true] %s455
      %458 = dma.vmem_to_hbm [thread:$0]  %s456, 128, %s11, [#allocation3]
    $region49: #{tpu_custom_call.1} parent=1 // pred_fallthru
      _
    // Predicated region
    $region50: #{tpu_custom_call.1} parent=1 // pred_check
      _
    $region51: #{tpu_custom_call.1} parent=1 // pred_check_branch
      %460 = sbr.rel (0) target = $region53
    $region52: #{tpu_custom_call.1} parent=1 // pred_region
      _
    $region53: #{tpu_custom_call.1} parent=1 // pred_fallthru
      _
    // Predicated region
    $region54: #{tpu_custom_call.1} parent=1 // pred_check
      _
    $region55: #{tpu_custom_call.1} parent=1 // pred_check_branch
      %462 = sbr.rel (0) target = $region57
    $region56: #{tpu_custom_call.1} parent=1 // pred_region
      %463 = dma.done [#allocation3], 128
    $region57: #{tpu_custom_call.1} parent=1 // pred_fallthru
      _
    // Predicated region
    $region58: #{tpu_custom_call.1} parent=1 // pred_check
      _
    $region59: #{tpu_custom_call.1} parent=1 // pred_check_branch
      %465 = sbr.rel (0) target = $region61
    $region60: #{tpu_custom_call.1} parent=1 // pred_region
      _
    $region61: #{tpu_custom_call.1} parent=1 // pred_fallthru
      _
    %466 = vsyncpa [#allocation3], 1

</llo_original>
